<compile_context>
chip_gen: v7x
topology: tpu7x:2x2x1
jax: 0.10.0
libtpu: 0.0.40
codegen_flags: <defaults>
</compile_context>

<pallas_src>
import functools
import math

import jax
import jax.numpy as jnp
import numpy as np
from jax.experimental import pallas as pl
from jax.experimental.pallas import tpu as pltpu


def _make_encoder_kernel(B, T, c_in, layer_sizes, K):
    """Builds the fused multi-layer encoder kernel (all static shapes closed over)."""
    P = K // 2
    L = len(layer_sizes)

    t_ins = []
    t = T
    for _ in layer_sizes:
        assert t % 2 == 0, "MaxPool1d(2,2) needs an even time length at every layer"
        t_ins.append(t)
        t //= 2

    def kernel(*refs):
        x_ref = refs[0]
        wb_refs = refs[1:1 + 2 * L]            # (w_0, b_0, w_1, b_1, ...)
        o_ref = refs[1 + 2 * L]
        scratch = refs[2 + 2 * L:]             # (pad_0, y_0, pad_1, y_1, ...)

        h = x_ref[...]                         # (B, t_in, ci) current activation
        ci = c_in
        for l, co in enumerate(layer_sizes):
            t_in, t_out = t_ins[l], t_ins[l] // 2
            w_ref, b_ref = wb_refs[2 * l], wb_refs[2 * l + 1]
            pad_ref, y_ref = scratch[2 * l], scratch[2 * l + 1]

            # --- Conv1d(same padding): zero-pad the time axis into VMEM scratch ---
            pad_ref[...] = jnp.zeros_like(pad_ref)
            pad_ref[:, pl.ds(P, t_in), :] = h

            # im2row: K shifted views concatenated along lanes -> (B*t_in, K*ci);
            # one MXU matmul against the (K*ci, co) flattened weight, + bias.
            taps = [pad_ref[:, pl.ds(k, t_in), :].reshape(B * t_in, ci)
                    for k in range(K)]
            y = jnp.dot(jnp.concatenate(taps, axis=-1), w_ref[...],
                        preferred_element_type=jnp.float32) + b_ref[...]

            # --- ChannelNorm divider: global max|.| over batch AND time rows ---
            inv = pl.reciprocal(
                jnp.max(jnp.abs(y), axis=0, keepdims=True) + 1e-5, approx=False)

            # --- MaxPool1d(2,2): stride-2 sublane reads of the pre-norm conv out.
            # Row pairs (2i, 2i+1) never straddle a batch because t_in is even.
            y_ref[...] = y
            pooled = jnp.maximum(y_ref[pl.ds(0, B * t_out, stride=2), :],
                                 y_ref[pl.ds(1, B * t_out, stride=2), :])

            # Pool / divide / ReLU commute (divider > 0): normalize + ReLU last.
            act = jnp.maximum(pooled * inv, 0.0)          # (B*t_out, co)

            if l + 1 < L:
                h = act.reshape(B, t_out, co)             # tile-aligned split
            else:
                o_ref[...] = act                          # single lane-dense store
            ci = co

    return kernel, t_ins


def encoder_forward(x_bct, params, K):
    """x_bct: (B, C_in, T) PyTorch NCL layout.  Returns (B, C_last, T // 2**L)."""
    B, C_in, T = x_bct.shape
    layer_sizes = [int(w.shape[0]) for w, _ in params]
    L = len(layer_sizes)
    C_last = layer_sizes[-1]
    T_out = T // (2 ** L)
    P = K // 2

    x_btc = jnp.transpose(x_bct, (0, 2, 1)).astype(jnp.float32)   # (B, T, C_in)

    # torch Conv1d weight (O, I, K) -> im2row weight (K*I, O); bias -> (1, O)
    flat_wb = []
    for w_oik, b in params:
        flat_wb.append(jnp.transpose(w_oik, (2, 1, 0)).reshape(-1, w_oik.shape[0]))
        flat_wb.append(b.reshape(1, -1))

    kernel, t_ins = _make_encoder_kernel(B, T, C_in, layer_sizes, K)

    scratch_shapes = []
    ci = C_in
    for l, co in enumerate(layer_sizes):
        scratch_shapes.append(pltpu.VMEM((B, t_ins[l] + 2 * P, ci), jnp.float32))
        scratch_shapes.append(pltpu.VMEM((B * t_ins[l], co), jnp.float32))
        ci = co

    # NOTE: at these shapes everything fits trivially in VMEM, so a single
    # ungridded call is optimal.  For realistic B/T, add a grid over batch/time
    # with BlockSpec tiling and a two-phase channel-norm reduction.
    out_flat = pl.pallas_call(
        kernel,
        out_shape=jax.ShapeDtypeStruct((B * T_out, C_last), jnp.float32),
        in_specs=[pl.BlockSpec(memory_space=pltpu.MemorySpace.VMEM)] * (1 + 2 * L),
        out_specs=pl.BlockSpec(memory_space=pltpu.MemorySpace.VMEM),
        scratch_shapes=scratch_shapes,
    )(x_btc, *flat_wb)

    # (B*T_out, C_last) -> (B, C_last, T_out)  (layout plumbing in the wrapper)
    return jnp.transpose(out_flat.reshape(B, T_out, C_last), (0, 2, 1))


def init_params(key, in_size, layer_sizes, K):
    """Deterministic Conv1d-style init (uniform +-1/sqrt(fan_in))."""
    params = []
    c_in = in_size
    for c_out in layer_sizes:
        key, k1, k2 = jax.random.split(key, 3)
        bound = 1.0 / math.sqrt(c_in * K)
        w = jax.random.uniform(k1, (c_out, c_in, K), jnp.float32, -bound, bound)
        b = jax.random.uniform(k2, (c_out,), jnp.float32, -bound, bound)
        params.append((w, b))
        c_in = c_out
    return params


def reference_forward(x_bct, params, K):
    """Pure-JAX reference reproducing the PyTorch module op-for-op."""
    h = x_bct
    P = K // 2
    for w, b in params:                                  # w: (O, I, K)
        T = h.shape[2]
        hp = jnp.pad(h, ((0, 0), (0, 0), (P, P)))
        y = jnp.zeros((h.shape[0], w.shape[0], T), jnp.float32)
        for k in range(K):
            y = y + jnp.einsum(
                "bit,oi->bot", hp[:, :, k:k + T], w[:, :, k],
                precision=jax.lax.Precision.HIGHEST)
        y = y + b[None, :, None]
        # ChannelNorm: max |.| over batch and time, per channel
        divider = jnp.max(jnp.max(jnp.abs(y), axis=0), axis=1) + 1e-5
        y = y / divider[None, :, None]
        y = jnp.maximum(y, 0.0)                          # ReLU
        Bb, Cc, Tt = y.shape
        h = jnp.max(y.reshape(Bb, Cc, Tt // 2, 2), axis=-1)   # MaxPool1d(2,2)
    return h


if __name__ == "__main__":
    B, C_in, T = 2, 4, 16
    layer_sizes = [8, 16]
    K = 3

    key = jax.random.PRNGKey(0)
    kx, kp = jax.random.split(key)
    x = jax.random.normal(kx, (B, C_in, T), jnp.float32)
    params = init_params(kp, C_in, layer_sizes, K)

    fwd = jax.jit(functools.partial(encoder_forward, K=K))
    y = jax.block_until_ready(fwd(x, params))

    assert y.shape == (B, layer_sizes[-1], T // 4), y.shape

    y_ref = reference_forward(x, params, K)
    np.testing.assert_allclose(np.asarray(y), np.asarray(y_ref), rtol=2e-3, atol=2e-3)

    print("KERNEL_OK")
</pallas_src>

<mosaic_0001>
module attributes {stable_mosaic.version = 11 : i64} {
  func.func @kernel(%arg0: memref<2x16x4xf32, #tpu.memory_space<vmem>>, %arg1: memref<12x8xf32, #tpu.memory_space<vmem>>, %arg2: memref<1x8xf32, #tpu.memory_space<vmem>>, %arg3: memref<24x16xf32, #tpu.memory_space<vmem>>, %arg4: memref<1x16xf32, #tpu.memory_space<vmem>>, %arg5: memref<8x16xf32, #tpu.memory_space<vmem>>, %arg6: memref<2x18x4xf32, #tpu.memory_space<vmem>>, %arg7: memref<32x8xf32, #tpu.memory_space<vmem>>, %arg8: memref<2x10x8xf32, #tpu.memory_space<vmem>>, %arg9: memref<16x16xf32, #tpu.memory_space<vmem>>) attributes {dimension_semantics = [], scalar_prefetch = 0 : i64, scratch_operands = 4 : i64, tpu.core_type = #tpu.core_type<tc>} {
    %c0 = arith.constant 0 : index
    %c0_0 = arith.constant 0 : index
    %c0_1 = arith.constant 0 : index
    %0 = vector.load %arg0[%c0, %c0_0, %c0_1] : memref<2x16x4xf32, #tpu.memory_space<vmem>>, vector<2x16x4xf32>
    %cst = arith.constant 0.000000e+00 : f32
    %1 = vector.broadcast %cst : f32 to vector<2x18x4xf32>
    %c0_2 = arith.constant 0 : index
    %c0_3 = arith.constant 0 : index
    %c0_4 = arith.constant 0 : index
    %2 = vector.load %arg6[%c0_2, %c0_3, %c0_4] : memref<2x18x4xf32, #tpu.memory_space<vmem>>, vector<2x18x4xf32>
    tpu.vector_store %arg6[%c0_2, %c0_3, %c0_4], %1 {strides = array<i32>} : memref<2x18x4xf32, #tpu.memory_space<vmem>>, vector<2x18x4xf32>,
    %c0_5 = arith.constant 0 : index
    %c1 = arith.constant 1 : index
    %c0_6 = arith.constant 0 : index
    %3 = vector.load %arg6[%c0_5, %c1, %c0_6] : memref<2x18x4xf32, #tpu.memory_space<vmem>>, vector<2x16x4xf32>
    tpu.vector_store %arg6[%c0_5, %c1, %c0_6], %0 {strides = array<i32>} : memref<2x18x4xf32, #tpu.memory_space<vmem>>, vector<2x16x4xf32>,
    %c0_7 = arith.constant 0 : index
    %c0_8 = arith.constant 0 : index
    %c0_9 = arith.constant 0 : index
    %4 = vector.load %arg6[%c0_7, %c0_8, %c0_9] : memref<2x18x4xf32, #tpu.memory_space<vmem>>, vector<2x16x4xf32>
    %5 = vector.shape_cast %4 : vector<2x16x4xf32> to vector<32x4xf32>
    %c0_10 = arith.constant 0 : index
    %c1_11 = arith.constant 1 : index
    %c0_12 = arith.constant 0 : index
    %6 = vector.load %arg6[%c0_10, %c1_11, %c0_12] : memref<2x18x4xf32, #tpu.memory_space<vmem>>, vector<2x16x4xf32>
    %7 = vector.shape_cast %6 : vector<2x16x4xf32> to vector<32x4xf32>
    %c0_13 = arith.constant 0 : index
    %c2 = arith.constant 2 : index
    %c0_14 = arith.constant 0 : index
    %8 = vector.load %arg6[%c0_13, %c2, %c0_14] : memref<2x18x4xf32, #tpu.memory_space<vmem>>, vector<2x16x4xf32>
    %9 = vector.shape_cast %8 : vector<2x16x4xf32> to vector<32x4xf32>
    %10 = tpu.concatenate %5, %7, %9 in 1 : vector<32x4xf32>, vector<32x4xf32>, vector<32x4xf32> -> vector<32x12xf32>
    %c0_15 = arith.constant 0 : index
    %c0_16 = arith.constant 0 : index
    %11 = vector.load %arg1[%c0_15, %c0_16] : memref<12x8xf32, #tpu.memory_space<vmem>>, vector<12x8xf32>
    %cst_17 = arith.constant dense<0.000000e+00> : vector<32x8xf32>
    %12 = tpu.matmul %10, %11, %cst_17 {dimension_numbers = #tpu.dot_dimension_numbers<[1], [0], [0], [1], [0, 0, 1, 1], [], []>} : vector<32x12xf32>, vector<12x8xf32>, vector<32x8xf32> -> vector<32x8xf32>
    %c0_18 = arith.constant 0 : index
    %c0_19 = arith.constant 0 : index
    %13 = vector.load %arg2[%c0_18, %c0_19] : memref<1x8xf32, #tpu.memory_space<vmem>>, vector<1x8xf32>
    %14 = vector.broadcast %13 : vector<1x8xf32> to vector<32x8xf32>
    %15 = arith.addf %12, %14 : vector<32x8xf32>
    %16 = math.absf %15 : vector<32x8xf32>
    %cst_20 = arith.constant dense<0xFF800000> : vector<8xf32>
    %17 = vector.multi_reduction <maximumf>, %16, %cst_20 [0] : vector<32x8xf32> to vector<8xf32>
    %18 = vector.shape_cast %17 : vector<8xf32> to vector<1x8xf32>
    %cst_21 = arith.constant 9.99999974E-6 : f32
    %19 = vector.broadcast %cst_21 : f32 to vector<1x8xf32>
    %20 = arith.addf %18, %19 : vector<1x8xf32>
    %21 = tpu.reciprocal %20 : vector<1x8xf32> -> vector<1x8xf32>
    %c0_22 = arith.constant 0 : index
    %c0_23 = arith.constant 0 : index
    %22 = vector.load %arg7[%c0_22, %c0_23] : memref<32x8xf32, #tpu.memory_space<vmem>>, vector<32x8xf32>
    tpu.vector_store %arg7[%c0_22, %c0_23], %15 {strides = array<i32>} : memref<32x8xf32, #tpu.memory_space<vmem>>, vector<32x8xf32>,
    %c0_24 = arith.constant 0 : index
    %c0_25 = arith.constant 0 : index
    %23 = tpu.strided_load %arg7[%c0_24, %c0_25] {strides = array<i32: 2, 1>} : memref<32x8xf32, #tpu.memory_space<vmem>>, vector<16x8xf32>
    %c1_26 = arith.constant 1 : index
    %c0_27 = arith.constant 0 : index
    %24 = tpu.strided_load %arg7[%c1_26, %c0_27] {strides = array<i32: 2, 1>} : memref<32x8xf32, #tpu.memory_space<vmem>>, vector<16x8xf32>
    %25 = arith.maximumf %23, %24 : vector<16x8xf32>
    %26 = vector.broadcast %21 : vector<1x8xf32> to vector<16x8xf32>
    %27 = arith.mulf %25, %26 : vector<16x8xf32>
    %cst_28 = arith.constant 0.000000e+00 : f32
    %28 = vector.broadcast %cst_28 : f32 to vector<16x8xf32>
    %29 = arith.maximumf %27, %28 : vector<16x8xf32>
    %30 = vector.shape_cast %29 : vector<16x8xf32> to vector<2x8x8xf32>
    %cst_29 = arith.constant 0.000000e+00 : f32
    %31 = vector.broadcast %cst_29 : f32 to vector<2x10x8xf32>
    %c0_30 = arith.constant 0 : index
    %c0_31 = arith.constant 0 : index
    %c0_32 = arith.constant 0 : index
    %32 = vector.load %arg8[%c0_30, %c0_31, %c0_32] : memref<2x10x8xf32, #tpu.memory_space<vmem>>, vector<2x10x8xf32>
    tpu.vector_store %arg8[%c0_30, %c0_31, %c0_32], %31 {strides = array<i32>} : memref<2x10x8xf32, #tpu.memory_space<vmem>>, vector<2x10x8xf32>,
    %c0_33 = arith.constant 0 : index
    %c1_34 = arith.constant 1 : index
    %c0_35 = arith.constant 0 : index
    %33 = vector.load %arg8[%c0_33, %c1_34, %c0_35] : memref<2x10x8xf32, #tpu.memory_space<vmem>>, vector<2x8x8xf32>
    tpu.vector_store %arg8[%c0_33, %c1_34, %c0_35], %30 {strides = array<i32>} : memref<2x10x8xf32, #tpu.memory_space<vmem>>, vector<2x8x8xf32>,
    %c0_36 = arith.constant 0 : index
    %c0_37 = arith.constant 0 : index
    %c0_38 = arith.constant 0 : index
    %34 = vector.load %arg8[%c0_36, %c0_37, %c0_38] : memref<2x10x8xf32, #tpu.memory_space<vmem>>, vector<2x8x8xf32>
    %35 = vector.shape_cast %34 : vector<2x8x8xf32> to vector<16x8xf32>
    %c0_39 = arith.constant 0 : index
    %c1_40 = arith.constant 1 : index
    %c0_41 = arith.constant 0 : index
    %36 = vector.load %arg8[%c0_39, %c1_40, %c0_41] : memref<2x10x8xf32, #tpu.memory_space<vmem>>, vector<2x8x8xf32>
    %37 = vector.shape_cast %36 : vector<2x8x8xf32> to vector<16x8xf32>
    %c0_42 = arith.constant 0 : index
    %c2_43 = arith.constant 2 : index
    %c0_44 = arith.constant 0 : index
    %38 = vector.load %arg8[%c0_42, %c2_43, %c0_44] : memref<2x10x8xf32, #tpu.memory_space<vmem>>, vector<2x8x8xf32>
    %39 = vector.shape_cast %38 : vector<2x8x8xf32> to vector<16x8xf32>
    %40 = tpu.concatenate %35, %37, %39 in 1 : vector<16x8xf32>, vector<16x8xf32>, vector<16x8xf32> -> vector<16x24xf32>
    %c0_45 = arith.constant 0 : index
    %c0_46 = arith.constant 0 : index
    %41 = vector.load %arg3[%c0_45, %c0_46] : memref<24x16xf32, #tpu.memory_space<vmem>>, vector<24x16xf32>
    %cst_47 = arith.constant dense<0.000000e+00> : vector<16x16xf32>
    %42 = tpu.matmul %40, %41, %cst_47 {dimension_numbers = #tpu.dot_dimension_numbers<[1], [0], [0], [1], [0, 0, 1, 1], [], []>} : vector<16x24xf32>, vector<24x16xf32>, vector<16x16xf32> -> vector<16x16xf32>
    %c0_48 = arith.constant 0 : index
    %c0_49 = arith.constant 0 : index
    %43 = vector.load %arg4[%c0_48, %c0_49] : memref<1x16xf32, #tpu.memory_space<vmem>>, vector<1x16xf32>
    %44 = vector.broadcast %43 : vector<1x16xf32> to vector<16x16xf32>
    %45 = arith.addf %42, %44 : vector<16x16xf32>
    %46 = math.absf %45 : vector<16x16xf32>
    %cst_50 = arith.constant dense<0xFF800000> : vector<16xf32>
    %47 = vector.multi_reduction <maximumf>, %46, %cst_50 [0] : vector<16x16xf32> to vector<16xf32>
    %48 = vector.shape_cast %47 : vector<16xf32> to vector<1x16xf32>
    %cst_51 = arith.constant 9.99999974E-6 : f32
    %49 = vector.broadcast %cst_51 : f32 to vector<1x16xf32>
    %50 = arith.addf %48, %49 : vector<1x16xf32>
    %51 = tpu.reciprocal %50 : vector<1x16xf32> -> vector<1x16xf32>
    %c0_52 = arith.constant 0 : index
    %c0_53 = arith.constant 0 : index
    %52 = vector.load %arg9[%c0_52, %c0_53] : memref<16x16xf32, #tpu.memory_space<vmem>>, vector<16x16xf32>
    tpu.vector_store %arg9[%c0_52, %c0_53], %45 {strides = array<i32>} : memref<16x16xf32, #tpu.memory_space<vmem>>, vector<16x16xf32>,
    %c0_54 = arith.constant 0 : index
    %c0_55 = arith.constant 0 : index
    %53 = tpu.strided_load %arg9[%c0_54, %c0_55] {strides = array<i32: 2, 1>} : memref<16x16xf32, #tpu.memory_space<vmem>>, vector<8x16xf32>
    %c1_56 = arith.constant 1 : index
    %c0_57 = arith.constant 0 : index
    %54 = tpu.strided_load %arg9[%c1_56, %c0_57] {strides = array<i32: 2, 1>} : memref<16x16xf32, #tpu.memory_space<vmem>>, vector<8x16xf32>
    %55 = arith.maximumf %53, %54 : vector<8x16xf32>
    %56 = vector.broadcast %51 : vector<1x16xf32> to vector<8x16xf32>
    %57 = arith.mulf %55, %56 : vector<8x16xf32>
    %cst_58 = arith.constant 0.000000e+00 : f32
    %58 = vector.broadcast %cst_58 : f32 to vector<8x16xf32>
    %59 = arith.maximumf %57, %58 : vector<8x16xf32>
    %c0_59 = arith.constant 0 : index
    %c0_60 = arith.constant 0 : index
    %60 = vector.load %arg5[%c0_59, %c0_60] : memref<8x16xf32, #tpu.memory_space<vmem>>, vector<8x16xf32>
    tpu.vector_store %arg5[%c0_59, %c0_60], %59 {strides = array<i32>} : memref<8x16xf32, #tpu.memory_space<vmem>>, vector<8x16xf32>,
    return
  }
}

</mosaic_0001>

<llo_original>
// kernel: encoder_forward.1
$region0: #{encoder_forward.1}
  #allocation0 [shape = 'u32[]', space=smem, size = 0x4, offset = 0x4, fixed_abs, tag = 'smem constant byte address 0x4 - core index']
  #allocation1 [shape = 'u32[144,128]{1,0:T(1,128)}', space=vmem, size = 0x12000, scoped, tag = 'internal scratch']
  #allocation2 [shape = 'f32[2,18,4]{2,1,0:T(8,128)}', space=vmem, size = 0x6000, scoped, tag = 'scratch operand']
  #allocation3 [shape = 'f32[32,8]{1,0:T(8,128)}', space=vmem, size = 0x4000, scoped, tag = 'scratch operand']
  #allocation4 [shape = 'f32[2,10,8]{2,1,0:T(8,128)}', space=vmem, size = 0x4000, scoped, tag = 'scratch operand']
  #allocation5 [shape = 'f32[16,16]{1,0:T(8,128)}', space=vmem, size = 0x2000, scoped, tag = 'scratch operand']
  %s0 = inlined_call_operand.vmem [shape: f32[2,16,4], index: 0, kind: input, shape index: {}]
  %s1 = inlined_call_operand.vmem [shape: f32[12,8], index: 1, kind: input, shape index: {}]
  %s2 = inlined_call_operand.vmem [shape: f32[1,8], index: 2, kind: input, shape index: {}]
  %s3 = inlined_call_operand.vmem [shape: f32[24,16], index: 3, kind: input, shape index: {}]
  %s4 = inlined_call_operand.vmem [shape: f32[1,16], index: 4, kind: input, shape index: {}]
  %s5 = inlined_call_operand.hbm [shape: f32[8,16], index: 5, kind: output, shape index: {}]
  %s6 = sld [smem:[#allocation0]]
  $region30: #{encoder_forward.1} parent=0
    _
  %s8 = ssub.s32 1, %s6
  %s9 = scalar_select 0, %s8, %s6
  $region1: #{encoder_forward.1} parent=0
    #allocation6 [shape = 'u8[4096]{0}', space=vmem, size = 0x1000, scoped, tag = 'output window, operand 0, single buffered']
    #allocation7 [shape = 's32[1]{0}', space=sflag, size = 0x4, scoped, tag = 'scoped memory for encoder_forward.1']
    %10 = vsyncpa [#allocation7], 0
    // Predicated region
    $region2: #{encoder_forward.1} parent=1 // pred_check
      _
    $region3: #{encoder_forward.1} parent=1 // pred_check_branch
      %12 = sbr.rel (0) target = $region5
    $region4: #{encoder_forward.1} parent=1 // pred_region
      _
    $region5: #{encoder_forward.1} parent=1 // pred_fallthru
      _
    // Predicated region
    $region6: #{encoder_forward.1} parent=1 // pred_check
      _
    $region7: #{encoder_forward.1} parent=1 // pred_check_branch
      %14 = sbr.rel (0) target = $region9
    $region8: #{encoder_forward.1} parent=1 // pred_region
      _
    $region9: #{encoder_forward.1} parent=1 // pred_fallthru
      _
    // Predicated region
    $region10: #{encoder_forward.1} parent=1 // pred_check
      _
    $region11: #{encoder_forward.1} parent=1 // pred_check_branch
      %16 = sbr.rel (0) target = $region13
    $region12: #{encoder_forward.1} parent=1 // pred_region
      _
    $region13: #{encoder_forward.1} parent=1 // pred_fallthru
      _
    // Predicated region
    $region14: #{encoder_forward.1} parent=1 // pred_check
      _
    $region15: #{encoder_forward.1} parent=1 // pred_check_branch
      %18 = sbr.rel (0) target = $region17
    $region16: #{encoder_forward.1} parent=1 // pred_region
      _
    $region17: #{encoder_forward.1} parent=1 // pred_fallthru
      _
    // Predicated region
    $region18: #{encoder_forward.1} parent=1 // pred_check
      _
    $region19: #{encoder_forward.1} parent=1 // pred_check_branch
      %20 = sbr.rel (0) target = $region21
    $region20: #{encoder_forward.1} parent=1 // pred_region
      _
    $region21: #{encoder_forward.1} parent=1 // pred_fallthru
      _
    %v21 = vld [vmem:[%s0] sm:$0xff]
    %v22 = vld [vmem:[%s0 + $0x8] sm:$0xff]
    %v23 = vld [vmem:[%s0 + $0x10] sm:$0xff]
    %v24 = vld [vmem:[%s0 + $0x18] sm:$0xff]
    %vm25 = vcmask 31744
    %26 = vst.msk [vmem:[#allocation2] sm:$0xff] %vm25, 0.0
    %27 = vst.msk [vmem:[#allocation2 + $0x8] sm:$0xff] %vm25, 0.0
    %vm28 = vcmask 25600
    %29 = vst.msk [vmem:[#allocation2 + $0x10] sm:$0x3] %vm28, 0.0
    %30 = vst.msk [vmem:[#allocation2 + $0x18] sm:$0xff] %vm25, 0.0
    %31 = vst.msk [vmem:[#allocation2 + $0x20] sm:$0xff] %vm25, 0.0
    %32 = vst.msk [vmem:[#allocation2 + $0x28] sm:$0x3] %vm28, 0.0
    %33 = vst.msk [vmem:[#allocation2 + $0x1] sm:$0xff] %vm25, %v21
    %34 = vst.msk [vmem:[#allocation2 + $0x9] sm:$0xff] %vm25, %v22
    %35 = vst.msk [vmem:[#allocation2 + $0x19] sm:$0xff] %vm25, %v23
    %36 = vst.msk [vmem:[#allocation2 + $0x21] sm:$0xff] %vm25, %v24
    %v37 = vld [vmem:[#allocation2] sm:$0xff]
    %v38 = vld [vmem:[#allocation2 + $0x8] sm:$0xff]
    %v39 = vld [vmem:[#allocation2 + $0x18] sm:$0xff]
    %v40 = vld [vmem:[#allocation2 + $0x20] sm:$0xff]
    %v41 = vld [vmem:[#allocation2 + $0x1] sm:$0xff]
    %v42 = vld [vmem:[#allocation2 + $0x9] sm:$0xff]
    %v43 = vld [vmem:[#allocation2 + $0x19] sm:$0xff]
    %v44 = vld [vmem:[#allocation2 + $0x21] sm:$0xff]
    %v45 = vld [vmem:[#allocation2 + $0x2] sm:$0xff]
    %v46 = vld [vmem:[#allocation2 + $0xa] sm:$0xff]
    %v47 = vld [vmem:[#allocation2 + $0x1a] sm:$0xff]
    %v48 = vld [vmem:[#allocation2 + $0x22] sm:$0xff]
    %53 = vrot.lane.b32.xlu0 %v41, 4
    %v54 = vpop.permute.xlu0 %53
    %55 = vrot.lane.b32.xlu0 %v42, 4
    %v56 = vpop.permute.xlu0 %55
    %57 = vrot.lane.b32.xlu0 %v43, 4
    %v58 = vpop.permute.xlu0 %57
    %59 = vrot.lane.b32.xlu0 %v44, 4
    %v60 = vpop.permute.xlu0 %59
    %69 = vrot.lane.b32.xlu0 %v45, 8
    %v70 = vpop.permute.xlu0 %69
    %71 = vrot.lane.b32.xlu0 %v46, 8
    %v72 = vpop.permute.xlu0 %71
    %73 = vrot.lane.b32.xlu0 %v47, 8
    %v74 = vpop.permute.xlu0 %73
    %75 = vrot.lane.b32.xlu0 %v48, 8
    %v76 = vpop.permute.xlu0 %75
    %v81 = vsel %vm25, %v37, %v54
    %v82 = vsel %vm25, %v38, %v56
    %v83 = vsel %vm25, %v39, %v58
    %v84 = vsel %vm25, %v40, %v60
    %vm85 = vcmask 64512
    %v86 = vsel %vm85, %v81, %v70
    %v87 = vsel %vm85, %v82, %v72
    %v88 = vsel %vm85, %v83, %v74
    %v89 = vsel %vm85, %v84, %v76
    %v90 = vld [vmem:[%s1] sm:$0xff]
    %v91 = vld [vmem:[%s1 + $0x8] sm:$0xf]
    %v92 = vld [vmem:[%s2] sm:$0x1]
    %v94 = vlaneseq
    %v95 = vshrl.u32 %v94, 7
    %v96 = vsub.s32 0, %v95
    %v97 = vrot.slane %v92, %v96
    %vm99 = vcmask 97280
    %v101 = vsel %vm99, %v86, 0
    %v104 = vsel %vm99, %v87, 0
    %v107 = vsel %vm99, %v88, 0
    %v110 = vsel %vm99, %v89, 0
    %vm112 = vcmask 1043456
    %v114 = vsel %vm112, %v91, 0
    %116 = vmatprep.subr.mxu0 0.0
    %117 = vmatpush1.msra.mxu0 %v90
    %118 = vmatprep.subr.mxu0 0.0
    %119 = vmatpush1.msra.mxu0 %v114
    %120 = vmatprep.subr.mxu0 0.0
    %121 = vmatpush1.msra.mxu0 0.0
    %122 = vmatprep.subr.mxu0 0.0
    %123 = vmatpush1.msra.mxu0 0.0
    %124 = vmatprep.subr.mxu0 0.0
    %125 = vmatpush1.msra.mxu0 0.0
    %126 = vmatprep.subr.mxu0 0.0
    %127 = vmatpush1.msra.mxu0 0.0
    %128 = vmatprep.subr.mxu0 0.0
    %129 = vmatpush1.msra.mxu0 0.0
    %130 = vmatprep.subr.mxu0 0.0
    %131 = vmatpush1.msra.mxu0 0.0
    %132 = vmatprep.subr.mxu0 0.0
    %133 = vmatpush1.msra.mxu0 0.0
    %134 = vmatprep.subr.mxu0 0.0
    %135 = vmatpush1.msra.mxu0 0.0
    %136 = vmatprep.subr.mxu0 0.0
    %137 = vmatpush1.msra.mxu0 0.0
    %138 = vmatprep.subr.mxu0 0.0
    %139 = vmatpush1.msra.mxu0 0.0
    %140 = vmatprep.subr.mxu0 0.0
    %141 = vmatpush1.msra.mxu0 0.0
    %142 = vmatprep.subr.mxu0 0.0
    %143 = vmatpush1.msra.mxu0 0.0
    %144 = vmatprep.subr.mxu0 0.0
    %145 = vmatpush1.msra.mxu0 0.0
    %146 = vmatprep.subr.mxu0 0.0
    %147 = vmatpush1.msra.mxu0 0.0
    %148 = vmatprep.subr.mxu0 0.0
    %149 = vmatpush1.msra.mxu0 0.0
    %150 = vmatprep.subr.mxu0 0.0
    %151 = vmatpush1.msra.mxu0 0.0
    %152 = vmatprep.subr.mxu0 0.0
    %153 = vmatpush1.msra.mxu0 0.0
    %154 = vmatprep.subr.mxu0 0.0
    %155 = vmatpush1.msra.mxu0 0.0
    %156 = vmatprep.subr.mxu0 0.0
    %157 = vmatpush1.msra.mxu0 0.0
    %158 = vmatprep.subr.mxu0 0.0
    %159 = vmatpush1.msra.mxu0 0.0
    %160 = vmatprep.subr.mxu0 0.0
    %161 = vmatpush1.msra.mxu0 0.0
    %162 = vmatprep.subr.mxu0 0.0
    %163 = vmatpush1.msra.mxu0 0.0
    %164 = vmatprep.subr.mxu0 0.0
    %165 = vmatpush1.msra.mxu0 0.0
    %166 = vmatprep.subr.mxu0 0.0
    %167 = vmatpush1.msra.mxu0 0.0
    %168 = vmatprep.subr.mxu0 0.0
    %169 = vmatpush1.msra.mxu0 0.0
    %170 = vmatprep.subr.mxu0 0.0
    %171 = vmatpush1.msra.mxu0 0.0
    %172 = vmatprep.subr.mxu0 0.0
    %173 = vmatpush1.msra.mxu0 0.0
    %174 = vmatprep.subr.mxu0 0.0
    %175 = vmatpush1.msra.mxu0 0.0
    %176 = vmatprep.subr.mxu0 0.0
    %177 = vmatpush1.msra.mxu0 0.0
    %178 = vmatprep.subr.mxu0 0.0
    %179 = vmatpush1.msra.mxu0 0.0
    %180 = vmatprep.mubr.f32.mxu0 0.0
    %181 = vmatmul.mubr.f32.gmra.mrb[0].mxu0 %v101
    %v182 = vpop.f32.mrb[0].mxu0
    %v183 = vadd.f32 %v97, %v182
    %v184 = vpop.f32.mrb[0].mxu0
    %185 = vmatprep.mubr.f32.mxu0 0.0
    %186 = vmatmul.mubr.f32.gmra.mrb[0].mxu0 %v104
    %v187 = vpop.f32.mrb[0].mxu0
    %v188 = vadd.f32 %v97, %v187
    %v189 = vpop.f32.mrb[0].mxu0
    %190 = vmatprep.mubr.f32.mxu0 0.0
    %191 = vmatmul.mubr.f32.gmra.mrb[0].mxu0 %v107
    %v192 = vpop.f32.mrb[0].mxu0
    %v193 = vadd.f32 %v97, %v192
    %v194 = vpop.f32.mrb[0].mxu0
    %195 = vmatprep.mubr.f32.mxu0 0.0
    %196 = vmatmul.mubr.f32.gmra.mrb[0].mxu0 %v110
    %v197 = vpop.f32.mrb[0].mxu0
    %v198 = vadd.f32 %v97, %v197
    %v199 = vpop.f32.mrb[0].mxu0
    %200 = vdwg.mxu0
    %v201 = vand.u32 2147483647, %v183
    %v202 = vand.u32 2147483647, %v188
    %v203 = vand.u32 2147483647, %v193
    %v204 = vand.u32 2147483647, %v198
    %v205 = vsel %vm85, %v201, -inf
    %v206 = vsel %vm85, %v202, -inf
    %v207 = vsel %vm85, %v203, -inf
    %v208 = vsel %vm85, %v204, -inf
    %v209 = vmax.f32 %v205, %v206
    %v210 = vmax.f32 %v207, %v208
    %v211 = vmax.f32 %v209, %v210
    %v212 = vrot.slane %v211, 4
    %v213 = vmax.f32 %v211, %v212
    %v214 = vrot.slane %v213, 2
    %v215 = vmax.f32 %v213, %v214
    %v216 = vrot.slane %v215, 1
    %v217 = vmax.f32 %v215, %v216
    %v218 = vadd.f32 %v217, 1e-05
    %v219 = vrcp.pop %v218
    %220 = vst.msk [vmem:[#allocation3] sm:$0xff] %vm85, %v183
    %221 = vst.msk [vmem:[#allocation3 + $0x8] sm:$0xff] %vm85, %v188
    %222 = vst.msk [vmem:[#allocation3 + $0x10] sm:$0xff] %vm85, %v193
    %223 = vst.msk [vmem:[#allocation3 + $0x18] sm:$0xff] %vm85, %v198
    %v224 = vld [vmem:[#allocation3] ss:$2 sm:$0xff]
    %s225 = scalar_lea.vmem [#allocation3], 16
    %v226 = vld [vmem:[%s225] ss:$2 sm:$0xff]
    %s227 = scalar_lea.vmem [#allocation3], 1
    %v228 = vld [vmem:[%s227] ss:$2 sm:$0xff]
    %s229 = scalar_lea.vmem [#allocation3], 17
    %v230 = vld [vmem:[%s229] ss:$2 sm:$0xff]
    %v231 = vmax.f32 %v224, %v228
    %v232 = vmax.f32 %v226, %v230
    %v233 = vmul.f32 %v231, %v219
    %v234 = vmul.f32 %v232, %v219
    %v235 = vmax.f32 %v233, 0.0
    %v236 = vmax.f32 %v234, 0.0
    %237 = vst.msk [vmem:[#allocation4] sm:$0xff] %vm85, 0.0
    %vm238 = vcmask 58368
    %239 = vst.msk [vmem:[#allocation4 + $0x8] sm:$0x3] %vm238, 0.0
    %240 = vst.msk [vmem:[#allocation4 + $0x10] sm:$0xff] %vm85, 0.0
    %241 = vst.msk [vmem:[#allocation4 + $0x18] sm:$0x3] %vm238, 0.0
    %242 = vst.msk [vmem:[#allocation4 + $0x1] sm:$0xff] %vm85, %v235
    %243 = vst.msk [vmem:[#allocation4 + $0x11] sm:$0xff] %vm85, %v236
    %v244 = vld [vmem:[#allocation4] sm:$0xff]
    %v245 = vld [vmem:[#allocation4 + $0x10] sm:$0xff]
    %v246 = vld [vmem:[#allocation4 + $0x1] sm:$0xff]
    %v247 = vld [vmem:[#allocation4 + $0x11] sm:$0xff]
    %v248 = vld [vmem:[#allocation4 + $0x2] sm:$0xff]
    %v249 = vld [vmem:[#allocation4 + $0x12] sm:$0xff]
    %252 = vrot.lane.b32.xlu0 %v246, 8
    %v253 = vpop.permute.xlu0 %252
    %254 = vrot.lane.b32.xlu0 %v247, 8
    %v255 = vpop.permute.xlu0 %254
    %260 = vrot.lane.b32.xlu0 %v248, 16
    %v261 = vpop.permute.xlu0 %260
    %262 = vrot.lane.b32.xlu0 %v249, 16
    %v263 = vpop.permute.xlu0 %262
    %v266 = vsel %vm85, %v244, %v253
    %v267 = vsel %vm85, %v245, %v255
    %vm268 = vcmask 130048
    %v269 = vsel %vm268, %v266, %v261
    %v270 = vsel %vm268, %v267, %v263
    %v271 = vld [vmem:[%s3] sm:$0xff]
    %v272 = vld [vmem:[%s3 + $0x8] sm:$0xff]
    %v273 = vld [vmem:[%s3 + $0x10] sm:$0xff]
    %v274 = vld [vmem:[%s4] sm:$0x1]
    %v276 = vlaneseq
    %v277 = vshrl.u32 %v276, 7
    %v278 = vsub.s32 0, %v277
    %v279 = vrot.slane %v274, %v278
    %vm281 = vcmask 195584
    %v283 = vsel %vm281, %v269, 0
    %v286 = vsel %vm281, %v270, 0
    %288 = vmatprep.subr.mxu0 0.0
    %289 = vmatpush1.msra.mxu0 %v271
    %290 = vmatprep.subr.mxu0 0.0
    %291 = vmatpush1.msra.mxu0 %v272
    %292 = vmatprep.subr.mxu0 0.0
    %293 = vmatpush1.msra.mxu0 %v273
    %294 = vmatprep.subr.mxu0 0.0
    %295 = vmatpush1.msra.mxu0 0.0
    %296 = vmatprep.subr.mxu0 0.0
    %297 = vmatpush1.msra.mxu0 0.0
    %298 = vmatprep.subr.mxu0 0.0
    %299 = vmatpush1.msra.mxu0 0.0
    %300 = vmatprep.subr.mxu0 0.0
    %301 = vmatpush1.msra.mxu0 0.0
    %302 = vmatprep.subr.mxu0 0.0
    %303 = vmatpush1.msra.mxu0 0.0
    %304 = vmatprep.subr.mxu0 0.0
    %305 = vmatpush1.msra.mxu0 0.0
    %306 = vmatprep.subr.mxu0 0.0
    %307 = vmatpush1.msra.mxu0 0.0
    %308 = vmatprep.subr.mxu0 0.0
    %309 = vmatpush1.msra.mxu0 0.0
    %310 = vmatprep.subr.mxu0 0.0
    %311 = vmatpush1.msra.mxu0 0.0
    %312 = vmatprep.subr.mxu0 0.0
    %313 = vmatpush1.msra.mxu0 0.0
    %314 = vmatprep.subr.mxu0 0.0
    %315 = vmatpush1.msra.mxu0 0.0
    %316 = vmatprep.subr.mxu0 0.0
    %317 = vmatpush1.msra.mxu0 0.0
    %318 = vmatprep.subr.mxu0 0.0
    %319 = vmatpush1.msra.mxu0 0.0
    %320 = vmatprep.subr.mxu0 0.0
    %321 = vmatpush1.msra.mxu0 0.0
    %322 = vmatprep.subr.mxu0 0.0
    %323 = vmatpush1.msra.mxu0 0.0
    %324 = vmatprep.subr.mxu0 0.0
    %325 = vmatpush1.msra.mxu0 0.0
    %326 = vmatprep.subr.mxu0 0.0
    %327 = vmatpush1.msra.mxu0 0.0
    %328 = vmatprep.subr.mxu0 0.0
    %329 = vmatpush1.msra.mxu0 0.0
    %330 = vmatprep.subr.mxu0 0.0
    %331 = vmatpush1.msra.mxu0 0.0
    %332 = vmatprep.subr.mxu0 0.0
    %333 = vmatpush1.msra.mxu0 0.0
    %334 = vmatprep.subr.mxu0 0.0
    %335 = vmatpush1.msra.mxu0 0.0
    %336 = vmatprep.subr.mxu0 0.0
    %337 = vmatpush1.msra.mxu0 0.0
    %338 = vmatprep.subr.mxu0 0.0
    %339 = vmatpush1.msra.mxu0 0.0
    %340 = vmatprep.subr.mxu0 0.0
    %341 = vmatpush1.msra.mxu0 0.0
    %342 = vmatprep.subr.mxu0 0.0
    %343 = vmatpush1.msra.mxu0 0.0
    %344 = vmatprep.subr.mxu0 0.0
    %345 = vmatpush1.msra.mxu0 0.0
    %346 = vmatprep.subr.mxu0 0.0
    %347 = vmatpush1.msra.mxu0 0.0
    %348 = vmatprep.subr.mxu0 0.0
    %349 = vmatpush1.msra.mxu0 0.0
    %350 = vmatprep.subr.mxu0 0.0
    %351 = vmatpush1.msra.mxu0 0.0
    %352 = vmatprep.mubr.f32.mxu0 0.0
    %353 = vmatmul.mubr.f32.gmra.mrb[0].mxu0 %v283
    %v354 = vpop.f32.mrb[0].mxu0
    %v355 = vadd.f32 %v279, %v354
    %v356 = vpop.f32.mrb[0].mxu0
    %357 = vmatprep.mubr.f32.mxu0 0.0
    %358 = vmatmul.mubr.f32.gmra.mrb[0].mxu0 %v286
    %v359 = vpop.f32.mrb[0].mxu0
    %v360 = vadd.f32 %v279, %v359
    %v361 = vpop.f32.mrb[0].mxu0
    %362 = vdwg.mxu0
    %v363 = vand.u32 2147483647, %v355
    %v364 = vand.u32 2147483647, %v360
    %v365 = vsel %vm268, %v363, -inf
    %v366 = vsel %vm268, %v364, -inf
    %v367 = vmax.f32 %v365, %v366
    %v368 = vrot.slane %v367, 4
    %v369 = vmax.f32 %v367, %v368
    %v370 = vrot.slane %v369, 2
    %v371 = vmax.f32 %v369, %v370
    %v372 = vrot.slane %v371, 1
    %v373 = vmax.f32 %v371, %v372
    %v374 = vadd.f32 %v373, 1e-05
    %v375 = vrcp.pop %v374
    %376 = vst.msk [vmem:[#allocation5] sm:$0xff] %vm268, %v355
    %377 = vst.msk [vmem:[#allocation5 + $0x8] sm:$0xff] %vm268, %v360
    %v378 = vld [vmem:[#allocation5] ss:$2 sm:$0xff]
    %s379 = scalar_lea.vmem [#allocation5], 1
    %v380 = vld [vmem:[%s379] ss:$2 sm:$0xff]
    %v381 = vmax.f32 %v378, %v380
    %v382 = vmul.f32 %v381, %v375
    %v383 = vmax.f32 %v382, 0.0
    %384 = vst.msk [vmem:[#allocation6] sm:$0xff] %vm268, %v383
    // Predicated region
    $region22: #{encoder_forward.1} parent=1 // pred_check
      _
    $region23: #{encoder_forward.1} parent=1 // pred_check_branch
      %386 = sbr.rel (0) target = $region25
    $region24: #{encoder_forward.1} parent=1 // pred_region
      %s388 = ssub.s32 128, 128
      %389 = vsyncadd [#allocation7], %s388
      %s391 = sshll.u32 [#allocation6], 4
      %s392 = int_to_ptr.vmem [resolvable:$true] %s391
      %394 = dma.vmem_to_hbm [thread:$0]  %s392, 128, %s5, [#allocation7]
    $region25: #{encoder_forward.1} parent=1 // pred_fallthru
      _
    // Predicated region
    $region26: #{encoder_forward.1} parent=1 // pred_check
      _
    $region27: #{encoder_forward.1} parent=1 // pred_check_branch
      %396 = sbr.rel (0) target = $region29
    $region28: #{encoder_forward.1} parent=1 // pred_region
      %397 = dma.done [#allocation7], 128
    $region29: #{encoder_forward.1} parent=1 // pred_fallthru
      _
    %398 = vsyncpa [#allocation7], 1

</llo_original>
